<compile_context>
chip_gen: v7x
topology: tpu7x:2x2x1
jax: 0.10.0
libtpu: 0.0.40
codegen_flags: <defaults>
</compile_context>

<pallas_src>
import functools
from itertools import combinations

import jax
import jax.numpy as jnp
from jax.experimental import pallas as pl
from jax.experimental.pallas import tpu as pltpu


# ----------------------------- tiling helpers ------------------------------

_TARGET_BLOCK_BYTES = 8 * 1024 * 1024      # per-grid-step (input + output) block budget
_MAX_BATCH_TILE = 4096                     # row cap; keeps blocks past the roofline knee
_MIN_SPLIT_BATCH = 64                      # below this, a single block beats 2 grid steps
_INNER_PAIRWISE_MAX_FIELDS = 32            # pairwise VPU inner-product path up to here
_ELEMENTWISE_FUSED_MAX_FIELDS = 64         # fused elementwise kernel (static unroll) up to here

_VMEM_LIMIT_CACHE = [None]


def _vmem_limit_bytes():
    """Generation-aware scoped-VMEM budget (v7x: 64 MiB/TC, v5e/v6e: 128 MiB)."""
    if _VMEM_LIMIT_CACHE[0] is None:
        try:
            cap = int(pltpu.get_tpu_info().vmem_capacity_bytes)
        except Exception:
            cap = 64 * 1024 * 1024         # unknown chip: assume the smallest (v7x per-TC)
        _VMEM_LIMIT_CACHE[0] = max(32 * 1024 * 1024,
                                   min((cap * 3) // 4, 96 * 1024 * 1024))
    return _VMEM_LIMIT_CACHE[0]


def _compiler_params():
    # "parallel" lets Mosaic shard the batch grid across the 2 TensorCores on v7x;
    # it is a harmless no-op on the single-TensorCore v5e/v6e.
    return pltpu.CompilerParams(
        dimension_semantics=("parallel",),
        vmem_limit_bytes=_vmem_limit_bytes(),
    )


def _sublane_multiple(dtype):
    # Min second-minor tile for packed dtypes: 8 rows f32, 16 bf16, 32 int8/fp8.
    return max(8, 32 // jnp.dtype(dtype).itemsize)


def _pick_batch_tile(batch, in_row_elems, out_row_elems, dtype):
    """Largest batch tile (rounded to the dtype's sublane packing) whose in+out block
    stays under the per-step budget; guarantees >= 2 grid steps for large batches."""
    itemsize = jnp.dtype(dtype).itemsize
    sub = _sublane_multiple(dtype)
    per_row = max(1, (in_row_elems + out_row_elems) * itemsize)
    tb = min(_TARGET_BLOCK_BYTES // per_row, _MAX_BATCH_TILE)
    if batch >= _MIN_SPLIT_BATCH:
        tb = min(tb, (batch + 1) // 2)     # >= 2 steps so both v7x cores get work
    if tb >= batch:
        return batch                       # single full block (block dims == array dims)
    tb = max(sub, (tb // sub) * sub)       # sublane-packing-friendly tile when B is split
    return min(tb, batch)


# ----------------------------- Pallas kernels ------------------------------

def _field_sum_and_sumsq(x_ref, num_fields, emb_dim):
    """f32 running sum and sum-of-squares over the field axis of a (TB, F*D) block."""
    d = emb_dim
    x0 = x_ref[:, 0:d].astype(jnp.float32)
    s = x0
    sq = x0 * x0
    for f in range(1, num_fields):
        xf = x_ref[:, f * d:(f + 1) * d].astype(jnp.float32)
        s = s + xf
        sq = sq + xf * xf
    return s, sq


def _bi_interaction_kernel(x_ref, o_ref, *, num_fields, emb_dim):
    # x_ref: (TB, F*D) lane-dense block -> o_ref: (TB, D)
    s, sq = _field_sum_and_sumsq(x_ref, num_fields, emb_dim)
    o_ref[...] = (0.5 * (s * s - sq)).astype(o_ref.dtype)


def _product_sum_kernel(x_ref, o_ref, *, num_fields, emb_dim):
    # x_ref: (TB, F*D) -> o_ref: (TB, 1)
    s, sq = _field_sum_and_sumsq(x_ref, num_fields, emb_dim)
    bi = 0.5 * (s * s - sq)
    o_ref[...] = jnp.sum(bi, axis=-1, keepdims=True).astype(o_ref.dtype)


def _inner_product_kernel(x_ref, o_ref, *, pairs, emb_dim):
    # x_ref: (TB, F*D) -> o_ref: (TB, P).  One pair at a time: re-slice x_ref per pair
    # (caching all field slices would spill the 64-vreg file), reduce on the XLU, and
    # store the output column directly -- no O(P) lane-concat epilogue.
    d = emb_dim
    for k, (p, q) in enumerate(pairs):
        a = x_ref[:, p * d:(p + 1) * d].astype(jnp.float32)
        b = x_ref[:, q * d:(q + 1) * d].astype(jnp.float32)
        o_ref[:, k:k + 1] = jnp.sum(a * b, axis=-1, keepdims=True).astype(o_ref.dtype)


def _elementwise_product_kernel(x_ref, o_ref, *, pairs, emb_dim, group):
    # x_ref: (TB, F*D) -> o_ref: (TB, P*D).  Fused field_p/field_q selection; `group`
    # pair products (group*D ~ 128 lanes) are lane-concatenated (XLU slot) and emitted
    # with one wide store per group so the vst slot sees lane-dense stores instead of P
    # masked D-lane partial stores.  Output traffic dominates this mode.
    d = emb_dim
    n_pairs = len(pairs)
    for g0 in range(0, n_pairs, group):
        g1 = min(g0 + group, n_pairs)
        prods = [x_ref[:, p * d:(p + 1) * d] * x_ref[:, q * d:(q + 1) * d]
                 for (p, q) in pairs[g0:g1]]
        blk = prods[0] if len(prods) == 1 else jnp.concatenate(prods, axis=-1)
        o_ref[:, g0 * d:g1 * d] = blk


def _gram_kernel(x_ref, o_ref):
    # Very-large-F inner_product fallback: batched MXU Gram for (TB, F, D) -> (TB, F, F).
    x = x_ref[...]
    o_ref[...] = jnp.einsum('bfd,bgd->bfg', x, x,
                            preferred_element_type=jnp.float32).astype(o_ref.dtype)


def _mul_kernel(a_ref, b_ref, o_ref):
    # Very-large-F elementwise_product fallback: tiled multiply of pre-gathered pairs.
    o_ref[...] = a_ref[...] * b_ref[...]


# ------------------------------ Module wrapper ------------------------------

class InnerProductLayer:
    """JAX/Pallas re-implementation of the PyTorch InnerProductLayer."""

    def __init__(self, num_fields=None, output='product_sum'):
        self._output_type = output
        if output not in ['product_sum', 'bi_interaction', 'inner_product',
                          'elementwise_product']:
            raise ValueError(
                'InnerProductLayer output={} is not supported.'.format(output))
        if num_fields is None:
            if output in ['inner_product', 'elementwise_product']:
                raise ValueError(
                    'num_fields is required when InnerProductLayer output={}.'.format(output))
            self.num_fields = None
            self.field_p = None
            self.field_q = None
            self._pairs = None
            self.interaction_units = None
        else:
            pairs = list(combinations(range(num_fields), 2))
            p, q = zip(*pairs)
            self.num_fields = num_fields
            # Deterministic "parameters" (index buffers), same values as the torch module.
            # torch.masked_select of the strict-upper-triangle mask in row-major order
            # yields exactly this (field_p, field_q) pair order.
            self.field_p = jnp.asarray(p, dtype=jnp.int32)
            self.field_q = jnp.asarray(q, dtype=jnp.int32)
            self._pairs = tuple((int(a), int(b)) for a, b in pairs)
            self.interaction_units = int(num_fields * (num_fields - 1) / 2)

    def __call__(self, feature_emb):
        B, F, D = feature_emb.shape
        dtype = feature_emb.dtype

        if self._output_type in ('bi_interaction', 'product_sum'):
            # Lane-dense 2-D view: free contiguous reshape, keeps VMEM tiles unpadded.
            x2d = feature_emb.reshape(B, F * D)
            out_cols = D if self._output_type == 'bi_interaction' else 1
            tb = _pick_batch_tile(B, F * D, out_cols, dtype)
            body = (_bi_interaction_kernel if self._output_type == 'bi_interaction'
                    else _product_sum_kernel)
            kernel = functools.partial(body, num_fields=F, emb_dim=D)
            return pl.pallas_call(
                kernel,
                out_shape=jax.ShapeDtypeStruct((B, out_cols), dtype),
                grid=(pl.cdiv(B, tb),),
                in_specs=[pl.BlockSpec((tb, F * D), lambda i: (i, 0))],
                out_specs=pl.BlockSpec((tb, out_cols), lambda i: (i, 0)),
                compiler_params=_compiler_params(),
            )(x2d)

        P = self.interaction_units

        if self._output_type == 'inner_product':
            if F <= _INNER_PAIRWISE_MAX_FIELDS:
                # Fused pairwise dot products (VPU/XLU), no Gram intermediate in HBM,
                # per-column stores.
                x2d = feature_emb.reshape(B, F * D)
                tb = _pick_batch_tile(B, F * D, P, dtype)
                kernel = functools.partial(_inner_product_kernel,
                                           pairs=self._pairs, emb_dim=D)
                return pl.pallas_call(
                    kernel,
                    out_shape=jax.ShapeDtypeStruct((B, P), dtype),
                    grid=(pl.cdiv(B, tb),),
                    in_specs=[pl.BlockSpec((tb, F * D), lambda i: (i, 0))],
                    out_specs=pl.BlockSpec((tb, P), lambda i: (i, 0)),
                    compiler_params=_compiler_params(),
                )(x2d)
            # Very-large-F fallback: batched MXU Gram per batch tile; static upper-triangle
            # gather (row-major == combinations order) done outside the kernel.
            # TODO(synk): emit the packed (B, P) upper triangle from the kernel directly
            # (scalar-prefetched pair table) to drop the extra (B, F, F) HBM round trips.
            tb = _pick_batch_tile(B, F * D, F * F, dtype)
            gram = pl.pallas_call(
                _gram_kernel,
                out_shape=jax.ShapeDtypeStruct((B, F, F), dtype),
                grid=(pl.cdiv(B, tb),),
                in_specs=[pl.BlockSpec((tb, F, D), lambda i: (i, 0, 0))],
                out_specs=pl.BlockSpec((tb, F, F), lambda i: (i, 0, 0)),
                compiler_params=_compiler_params(),
            )(feature_emb)
            return gram[:, self.field_p, self.field_q]

        # elementwise_product
        if F <= _ELEMENTWISE_FUSED_MAX_FIELDS:
            x2d = feature_emb.reshape(B, F * D)
            tb = _pick_batch_tile(B, F * D, P * D, dtype)
            group = 1 if D >= 128 else max(1, 128 // D)
            kernel = functools.partial(_elementwise_product_kernel,
                                       pairs=self._pairs, emb_dim=D, group=group)
            out2d = pl.pallas_call(
                kernel,
                out_shape=jax.ShapeDtypeStruct((B, P * D), dtype),
                grid=(pl.cdiv(B, tb),),
                in_specs=[pl.BlockSpec((tb, F * D), lambda i: (i, 0))],
                out_specs=pl.BlockSpec((tb, P * D), lambda i: (i, 0)),
                compiler_params=_compiler_params(),
            )(x2d)
            return out2d.reshape(B, P, D)
        # Very-large-F fallback (F > 64): static gathers then a tiled multiply kernel.
        # TODO(synk): replace with a scalar-prefetched (field_p, field_q) pair-table kernel
        # (dynamic pl.ds field slices) to avoid materializing 2x(B, P, D) gathers in HBM.
        emb1 = jnp.take(feature_emb, self.field_p, axis=1).reshape(B, P * D)
        emb2 = jnp.take(feature_emb, self.field_q, axis=1).reshape(B, P * D)
        tb = _pick_batch_tile(B, 2 * P * D, P * D, dtype)
        out2d = pl.pallas_call(
            _mul_kernel,
            out_shape=jax.ShapeDtypeStruct((B, P * D), dtype),
            grid=(pl.cdiv(B, tb),),
            in_specs=[pl.BlockSpec((tb, P * D), lambda i: (i, 0)),
                      pl.BlockSpec((tb, P * D), lambda i: (i, 0))],
            out_specs=pl.BlockSpec((tb, P * D), lambda i: (i, 0)),
            compiler_params=_compiler_params(),
        )(emb1, emb2)
        return out2d.reshape(B, P, D)


# ------------------------------ Reference (plain JAX) ------------------------------

def _reference(feature_emb, num_fields, output):
    p, q = zip(*list(combinations(range(num_fields), 2)))
    p = jnp.asarray(p)
    q = jnp.asarray(q)
    if output in ('product_sum', 'bi_interaction'):
        sum_of_square = jnp.sum(feature_emb, axis=1) ** 2
        square_of_sum = jnp.sum(feature_emb ** 2, axis=1)
        bi = (sum_of_square - square_of_sum) * 0.5
        return bi if output == 'bi_interaction' else jnp.sum(bi, axis=-1, keepdims=True)
    if output == 'elementwise_product':
        return feature_emb[:, p, :] * feature_emb[:, q, :]
    gram = jnp.einsum('bfd,bgd->bfg', feature_emb, feature_emb)
    return gram[:, p, q]


def _check(feature_emb, num_fields, mode, expected_shape):
    layer = InnerProductLayer(num_fields=num_fields, output=mode)
    out = jax.block_until_ready(layer(feature_emb))
    ref = _reference(feature_emb, num_fields, mode)
    ok = True
    if out.shape != expected_shape:
        ok = False
        print(f"shape mismatch (F={num_fields}, B={feature_emb.shape[0]}) {mode}: "
              f"{out.shape} vs {expected_shape}")
    if not jnp.allclose(out, ref, atol=1e-4, rtol=1e-4):
        ok = False
        print(f"value mismatch (F={num_fields}, B={feature_emb.shape[0]}) {mode}")
    return ok


# ------------------------------------ Main ------------------------------------

if __name__ == "__main__":
    D = 32
    ok = True

    # Small shapes (single-block grid) and a larger batch (multi-step grid, >=2 steps).
    F = 4
    for B in (2, 256):
        emb = jax.random.normal(jax.random.PRNGKey(0), (B, F, D), dtype=jnp.float32)
        P = F * (F - 1) // 2
        expected = {
            'product_sum': (B, 1),
            'bi_interaction': (B, D),
            'inner_product': (B, P),
            'elementwise_product': (B, P, D),
        }
        for mode in ['product_sum', 'bi_interaction', 'inner_product', 'elementwise_product']:
            ok &= _check(emb, F, mode, expected[mode])

    # Mid-size F: now covered by the pairwise / fused kernels (no Gram fallback).
    B, F2 = 2, 20
    emb2 = jax.random.normal(jax.random.PRNGKey(1), (B, F2, D), dtype=jnp.float32)
    P2 = F2 * (F2 - 1) // 2
    ok &= _check(emb2, F2, 'inner_product', (B, P2))
    ok &= _check(emb2, F2, 'elementwise_product', (B, P2, D))

    # Very large F: exercises the batched-MXU Gram fallback for inner_product.
    B, F3 = 2, 40
    emb3 = jax.random.normal(jax.random.PRNGKey(2), (B, F3, D), dtype=jnp.float32)
    P3 = F3 * (F3 - 1) // 2
    ok &= _check(emb3, F3, 'inner_product', (B, P3))

    if ok:
        print("KERNEL_OK")
</pallas_src>

<mosaic_0001>
module attributes {stable_mosaic.version = 11 : i64} {
  func.func @_product_sum_kernel(%arg0: i32, %arg1: memref<2x128xf32, #tpu.memory_space<vmem>>, %arg2: memref<2x1xf32, #tpu.memory_space<vmem>>) attributes {dimension_semantics = [#tpu.dimension_semantics<parallel>], iteration_bounds = array<i64: 1>, scalar_prefetch = 0 : i64, scratch_operands = 0 : i64, tpu.core_type = #tpu.core_type<tc>, window_params = [{transform_indices = @transform_0, window_bounds = array<i64: 2, 128>}, {transform_indices = @transform_1, window_bounds = array<i64: 2, 1>}]} {
    %c0 = arith.constant 0 : index
    %c0_0 = arith.constant 0 : index
    %0 = vector.load %arg1[%c0, %c0_0] : memref<2x128xf32, #tpu.memory_space<vmem>>, vector<2x32xf32>
    %1 = arith.mulf %0, %0 : vector<2x32xf32>
    %c0_1 = arith.constant 0 : index
    %c32 = arith.constant 32 : index
    %2 = vector.load %arg1[%c0_1, %c32] : memref<2x128xf32, #tpu.memory_space<vmem>>, vector<2x32xf32>
    %3 = arith.addf %0, %2 : vector<2x32xf32>
    %4 = arith.mulf %2, %2 : vector<2x32xf32>
    %5 = arith.addf %1, %4 : vector<2x32xf32>
    %c0_2 = arith.constant 0 : index
    %c64 = arith.constant 64 : index
    %6 = vector.load %arg1[%c0_2, %c64] : memref<2x128xf32, #tpu.memory_space<vmem>>, vector<2x32xf32>
    %7 = arith.addf %3, %6 : vector<2x32xf32>
    %8 = arith.mulf %6, %6 : vector<2x32xf32>
    %9 = arith.addf %5, %8 : vector<2x32xf32>
    %c0_3 = arith.constant 0 : index
    %c96 = arith.constant 96 : index
    %10 = vector.load %arg1[%c0_3, %c96] : memref<2x128xf32, #tpu.memory_space<vmem>>, vector<2x32xf32>
    %11 = arith.addf %7, %10 : vector<2x32xf32>
    %12 = arith.mulf %10, %10 : vector<2x32xf32>
    %13 = arith.addf %9, %12 : vector<2x32xf32>
    %14 = arith.mulf %11, %11 : vector<2x32xf32>
    %15 = arith.subf %14, %13 : vector<2x32xf32>
    %cst = arith.constant 5.000000e-01 : f32
    %16 = vector.broadcast %cst : f32 to vector<2x32xf32>
    %17 = arith.mulf %16, %15 : vector<2x32xf32>
    %cst_4 = arith.constant dense<0.000000e+00> : vector<2xf32>
    %18 = vector.multi_reduction <add>, %17, %cst_4 [1] : vector<2x32xf32> to vector<2xf32>
    %19 = vector.shape_cast %18 : vector<2xf32> to vector<2x1xf32>
    %c0_5 = arith.constant 0 : index
    %c0_6 = arith.constant 0 : index
    %20 = vector.load %arg2[%c0_5, %c0_6] : memref<2x1xf32, #tpu.memory_space<vmem>>, vector<2x1xf32>
    tpu.vector_store %arg2[%c0_5, %c0_6], %19 {strides = array<i32>} : memref<2x1xf32, #tpu.memory_space<vmem>>, vector<2x1xf32>,
    return
  }
  func.func @transform_0(%arg0: i32) -> (i32, i32) {
    %c0_i32 = arith.constant 0 : i32
    %c0_i32_0 = arith.constant 0 : i32
    return %arg0, %c0_i32 : i32, i32
  }
  func.func @transform_1(%arg0: i32) -> (i32, i32) {
    %c0_i32 = arith.constant 0 : i32
    %c0_i32_0 = arith.constant 0 : i32
    return %arg0, %c0_i32 : i32, i32
  }
}

</mosaic_0001>

<llo_original>
// kernel: tpu_custom_call.1
$region0: #{tpu_custom_call.1}
  #allocation0 [shape = 'u32[]', space=smem, size = 0x4, offset = 0x4, fixed_abs, tag = 'smem constant byte address 0x4 - core index']
  #allocation1 [shape = 'u32[144,128]{1,0:T(1,128)}', space=vmem, size = 0x12000, scoped, tag = 'internal scratch']
  %s0 = inlined_call_operand.hbm [shape: f32[2,128], index: 0, kind: input, shape index: {}]
  %s1 = inlined_call_operand.vmem [shape: f32[2,1], index: 1, kind: output, shape index: {}]
  %s2 = sld [smem:[#allocation0]]
  $region18: #{tpu_custom_call.1} parent=0
    _
  %s4 = ssub.s32 1, %s2
  %s5 = scalar_select 0, %s4, %s2
  $region1: #{tpu_custom_call.1} parent=0
    #allocation2 [shape = 'u8[1024]{0}', space=vmem, size = 0x400, scoped, tag = 'input window, operand 0, single buffered']
    #allocation3 [shape = 's32[1]{0}', space=sflag, size = 0x4, scoped, tag = 'scoped memory for tpu_custom_call.1']
    %6 = vsyncpa [#allocation3], 0
    // Predicated region
    $region2: #{tpu_custom_call.1} parent=1 // pred_check
      _
    $region3: #{tpu_custom_call.1} parent=1 // pred_check_branch
      %8 = sbr.rel (0) target = $region5
    $region4: #{tpu_custom_call.1} parent=1 // pred_region
      %s10 = ssub.s32 32, 32
      %11 = vsyncadd [#allocation3], %s10
      %s13 = sshll.u32 [#allocation2], 4
      %s14 = int_to_ptr.vmem [resolvable:$true] %s13
      %16 = dma.hbm_to_vmem [thread:$0]  %s0, 32, %s14, [#allocation3]
    $region5: #{tpu_custom_call.1} parent=1 // pred_fallthru
      _
    // Predicated region
    $region6: #{tpu_custom_call.1} parent=1 // pred_check
      _
    $region7: #{tpu_custom_call.1} parent=1 // pred_check_branch
      %18 = sbr.rel (0) target = $region9
    $region8: #{tpu_custom_call.1} parent=1 // pred_region
      %19 = dma.done [#allocation3], 32
    $region9: #{tpu_custom_call.1} parent=1 // pred_fallthru
      _
    %v20 = vld [vmem:[#allocation2] sm:$0x3]
    %v21 = vmul.f32 %v20, %v20
    %23 = vrot.lane.b32.xlu0 %v20, 96
    %v24 = vpop.permute.xlu0 %23
    %v26 = vadd.f32 %v20, %v24
    %28 = vrot.lane.b32.xlu0 %v21, 96
    %v29 = vpop.permute.xlu0 %28
    %v31 = vadd.f32 %v21, %v29
    %32 = vrot.lane.b32.xlu0 %v20, 64
    %v33 = vpop.permute.xlu0 %32
    %v35 = vadd.f32 %v26, %v33
    %36 = vrot.lane.b32.xlu0 %v21, 64
    %v37 = vpop.permute.xlu0 %36
    %v39 = vadd.f32 %v31, %v37
    %40 = vrot.lane.b32.xlu0 %v20, 32
    %v41 = vpop.permute.xlu0 %40
    %v43 = vadd.f32 %v35, %v41
    %44 = vrot.lane.b32.xlu0 %v21, 32
    %v45 = vpop.permute.xlu0 %44
    %v47 = vadd.f32 %v39, %v45
    %v48 = vmul.f32 %v43, %v43
    %v49 = vsub.f32 %v48, %v47
    %v50 = vmul.f32 %v49, 0.5
    %vm51 = vcmask 254976
    %v52 = vsel %vm51, %v50, 0.0
    %53 = vadd.xlane.f32.xlu0 %v52
    %v54 = vpop.xlane.xlu0 %53
    %vm55 = vcmask 1024
    %56 = vst.msk [vmem:[%s1] sm:$0x3] %vm55, %v54
    // Predicated region
    $region10: #{tpu_custom_call.1} parent=1 // pred_check
      _
    $region11: #{tpu_custom_call.1} parent=1 // pred_check_branch
      %58 = sbr.rel (0) target = $region13
    $region12: #{tpu_custom_call.1} parent=1 // pred_region
      _
    $region13: #{tpu_custom_call.1} parent=1 // pred_fallthru
      _
    // Predicated region
    $region14: #{tpu_custom_call.1} parent=1 // pred_check
      _
    $region15: #{tpu_custom_call.1} parent=1 // pred_check_branch
      %60 = sbr.rel (0) target = $region17
    $region16: #{tpu_custom_call.1} parent=1 // pred_region
      _
    $region17: #{tpu_custom_call.1} parent=1 // pred_fallthru
      _
    %61 = vsyncpa [#allocation3], 1

</llo_original>
